<compile_context>
chip_gen: v6e
topology: v6e:2x2x1
jax: 0.10.0
libtpu: 0.0.40
codegen_flags: <defaults>
</compile_context>

<pallas_src>
import functools

import jax
import jax.numpy as jnp
from jax.experimental import pallas as pl
from jax.experimental.pallas import tpu as pltpu

_LANE = 128
_CHUNK_ROWS = 8   # one (8, 128) vreg per class plane per temporary


def _dice_partial_kernel(pred_ref, tgt_ref, inter_ref, union_ref, *,
                         num_classes, tile_rows):
    """Grid = (B, n_split, R // tile_rows).

    pred_ref / tgt_ref : (1, C, tile_rows, 128) VMEM input blocks.
    inter_ref / union_ref : (1, 1, C, 8, 128) resident output accumulators
    (index map constant across the spatial-row grid axis).
    """
    r_idx = pl.program_id(2)

    # ---- init accumulators at the first spatial tile of each (b, split) ----
    @pl.when(r_idx == 0)
    def _init():
        inter_ref[...] = jnp.zeros_like(inter_ref)
        union_ref[...] = jnp.zeros_like(union_ref)

    n_chunks = tile_rows // _CHUNK_ROWS

    # Walk the VMEM block in (8, 128)-pixel chunks so the live register set
    # stays at ~O(C) vregs no matter how large the HBM tile is.
    @pl.loop(0, n_chunks)
    def _chunk(j):
        row = pl.multiple_of(j * _CHUNK_ROWS, _CHUNK_ROWS)
        rows = pl.ds(row, _CHUNK_ROWS)

        # Load the C class planes of this chunk, upcast to f32.
        p = [pred_ref[0, c, rows, :].astype(jnp.float32)
             for c in range(num_classes)]

        # Numerically-stable softmax over classes: elementwise max / add over
        # the class planes (VPU slot only), one reciprocal (EUP).
        m = p[0]
        for c in range(1, num_classes):
            m = jnp.maximum(m, p[c])
        e = [jnp.exp(p[c] - m) for c in range(num_classes)]
        denom = e[0]
        for c in range(1, num_classes):
            denom = denom + e[c]
        inv = pl.reciprocal(denom, approx=False)

        # Accumulate intersection / union directly into the resident,
        # lane-dense output blocks.
        for c in range(num_classes):
            sm = e[c] * inv
            t = tgt_ref[0, c, rows, :].astype(jnp.float32)
            inter_ref[0, 0, c] += sm * t
            union_ref[0, 0, c] += sm + t


def _vmem_capacity_bytes():
    try:
        info = pltpu.get_tpu_info()
        return int(getattr(info, "vmem_capacity_bytes", 64 * 1024 * 1024))
    except Exception:  # query unsupported in some environments
        return 64 * 1024 * 1024


def _choose_tile_rows(s, num_classes, itemsize, row_align, target_block_bytes):
    """tile_rows multiple of row_align, sized so one input block is roughly
    target_block_bytes (double-buffered x 2 inputs stays well inside VMEM)."""
    max_rows = target_block_bytes // max(1, num_classes * _LANE * itemsize)
    max_rows = max(row_align, (max_rows // row_align) * row_align)
    r = (s + _LANE - 1) // _LANE
    r = ((r + row_align - 1) // row_align) * row_align
    return min(r, max_rows)


def dice_loss(prediction, target, num_classes, log_loss=False,
              tile_rows=None, n_split=None):
    """prediction, target: (B, C, H, W) (f32 or bf16), C == num_classes."""
    B = prediction.shape[0]
    C = num_classes
    assert prediction.shape[1] == C and target.shape[1] == C

    pred = prediction.reshape(B, C, -1)
    tgt = target.reshape(B, C, -1)
    S = pred.shape[-1]

    itemsize = max(jnp.dtype(pred.dtype).itemsize,
                   jnp.dtype(tgt.dtype).itemsize)
    # Sub-32-bit dtypes pack sublanes in pairs -> keep tiles 16-row aligned.
    row_align = _CHUNK_ROWS if itemsize >= 4 else 2 * _CHUNK_ROWS

    if n_split is None:
        # v7x has 2 TensorCores; give both work when the batch axis cannot.
        n_split = 2 if B < 2 else 1

    # Bigger blocks on 128 MiB-VMEM parts (v5e/v6e), conservative on v7x.
    target_block_bytes = (4 * 1024 * 1024
                          if _vmem_capacity_bytes() > 96 * 1024 * 1024
                          else 2 * 1024 * 1024)

    if tile_rows is None:
        tile_rows = _choose_tile_rows(S, C, itemsize, row_align,
                                      target_block_bytes)
    else:
        tile_rows = max(row_align, (int(tile_rows) // row_align) * row_align)

    # Pad the flattened spatial axis to a multiple of n_split*tile_rows*128
    # pixels, then re-layout so the lane axis is dense and the sublane axis
    # carries spatial rows (no class-axis sublane padding).
    row_quant = n_split * tile_rows
    R = (S + _LANE - 1) // _LANE
    R_pad = ((R + row_quant - 1) // row_quant) * row_quant
    s_pad = R_pad * _LANE
    n_pad = s_pad - S
    if n_pad:
        pad = [(0, 0), (0, 0), (0, n_pad)]
        pred = jnp.pad(pred, pad)
        tgt = jnp.pad(tgt, pad)
    pred = pred.reshape(B, C, R_pad, _LANE)
    tgt = tgt.reshape(B, C, R_pad, _LANE)

    n_r = R_pad // (n_split * tile_rows)

    kernel = functools.partial(_dice_partial_kernel,
                               num_classes=C, tile_rows=tile_rows)

    grid_spec = pltpu.PrefetchScalarGridSpec(
        num_scalar_prefetch=0,
        grid=(B, n_split, n_r),
        in_specs=[
            pl.BlockSpec((1, C, tile_rows, _LANE),
                         lambda b, h, r: (b, 0, h * n_r + r, 0)),
            pl.BlockSpec((1, C, tile_rows, _LANE),
                         lambda b, h, r: (b, 0, h * n_r + r, 0)),
        ],
        out_specs=(
            pl.BlockSpec((1, 1, C, _CHUNK_ROWS, _LANE),
                         lambda b, h, r: (b, h, 0, 0, 0)),
            pl.BlockSpec((1, 1, C, _CHUNK_ROWS, _LANE),
                         lambda b, h, r: (b, h, 0, 0, 0)),
        ),
    )

    inter, union = pl.pallas_call(
        kernel,
        out_shape=(
            jax.ShapeDtypeStruct((B, n_split, C, _CHUNK_ROWS, _LANE),
                                 jnp.float32),
            jax.ShapeDtypeStruct((B, n_split, C, _CHUNK_ROWS, _LANE),
                                 jnp.float32),
        ),
        grid_spec=grid_spec,
        compiler_params=pltpu.CompilerParams(
            dimension_semantics=("parallel", "parallel", "arbitrary"),
            vmem_limit_bytes=48 * 1024 * 1024,
        ),
    )(pred, tgt)

    # Tiny epilogue in plain JAX: reduce the lane-dense partials, correct the
    # padding contribution (softmax of zero logits is exactly 1/C per class;
    # padded target rows are zero), and form dice / loss.
    inter = jnp.sum(inter, axis=(1, 3, 4))                      # (B, C)
    union = jnp.sum(union, axis=(1, 3, 4)) - n_pad / C          # (B, C)
    dice = 2.0 * inter / union
    if log_loss:
        dice = jnp.log(dice)
    return 1.0 - jnp.mean(dice)


def _dice_loss_ref(prediction, target, num_classes, log_loss=False):
    B = prediction.shape[0]
    p = jax.nn.softmax(prediction.astype(jnp.float32), axis=1)
    p = p.reshape(B, num_classes, -1)
    t = target.astype(jnp.float32).reshape(B, num_classes, -1)
    inter = jnp.sum(p * t, axis=-1)
    union = jnp.sum(p, axis=-1) + jnp.sum(t, axis=-1)
    dice = 2.0 * inter / union
    if log_loss:
        dice = jnp.log(dice)
    return 1.0 - jnp.mean(dice)


def _make_inputs(key, B, C, H, W):
    k_pred, k_lbl = jax.random.split(key)
    prediction = jax.random.normal(k_pred, (B, C, H, W), dtype=jnp.float32)
    labels = jax.random.randint(k_lbl, (B, H, W), 0, C)
    target = jax.nn.one_hot(labels, C, dtype=jnp.float32)      # (B, H, W, C)
    target = jnp.transpose(target, (0, 3, 1, 2))               # (B, C, H, W)
    return prediction, target


if __name__ == "__main__":
    # 1) Base case (2, 4, 16, 16): single spatial tile per batch row.
    B, C, H, W = 2, 4, 16, 16
    pred, tgt = _make_inputs(jax.random.PRNGKey(0), B, C, H, W)
    loss = jax.block_until_ready(dice_loss(pred, tgt, num_classes=C))
    ref = _dice_loss_ref(pred, tgt, num_classes=C)
    assert jnp.allclose(loss, ref, atol=2e-5, rtol=1e-5), (loss, ref)

    # 2) Larger spatial with a forced small tile -> multi-step accumulation
    #    along the "arbitrary" spatial-row grid axis.
    pred2, tgt2 = _make_inputs(jax.random.PRNGKey(1), 2, 4, 64, 64)
    loss2 = jax.block_until_ready(
        dice_loss(pred2, tgt2, num_classes=4, tile_rows=8))
    ref2 = _dice_loss_ref(pred2, tgt2, num_classes=4)
    assert jnp.allclose(loss2, ref2, atol=2e-5, rtol=1e-5), (loss2, ref2)

    # 3) Odd spatial size (15x15 = 225 px, not a multiple of 128) with
    #    log_loss and B=1 -> exercises the padding correction, the log path
    #    and the n_split=2 (two-TensorCore) path.
    pred3, tgt3 = _make_inputs(jax.random.PRNGKey(2), 1, 4, 15, 15)
    loss3 = jax.block_until_ready(
        dice_loss(pred3, tgt3, num_classes=4, log_loss=True))
    ref3 = _dice_loss_ref(pred3, tgt3, num_classes=4, log_loss=True)
    assert jnp.allclose(loss3, ref3, atol=2e-5, rtol=1e-5), (loss3, ref3)

    # 4) bf16 inputs stream at half the HBM bytes; compute stays f32.
    p_bf = pred2.astype(jnp.bfloat16)
    t_bf = tgt2.astype(jnp.bfloat16)
    loss4 = jax.block_until_ready(dice_loss(p_bf, t_bf, num_classes=4))
    ref4 = _dice_loss_ref(p_bf, t_bf, num_classes=4)
    assert jnp.allclose(loss4, ref4, atol=2e-5, rtol=1e-5), (loss4, ref4)

    print("KERNEL_OK")
</pallas_src>

<mosaic_0001>
module attributes {stable_mosaic.version = 11 : i64} {
  func.func @_dice_partial_kernel(%arg0: i32, %arg1: i32, %arg2: i32, %arg3: memref<1x4x8x128xf32, #tpu.memory_space<vmem>>, %arg4: memref<1x4x8x128xf32, #tpu.memory_space<vmem>>, %arg5: memref<1x1x4x8x128xf32, #tpu.memory_space<vmem>>, %arg6: memref<1x1x4x8x128xf32, #tpu.memory_space<vmem>>) attributes {dimension_semantics = [#tpu.dimension_semantics<parallel>, #tpu.dimension_semantics<parallel>, #tpu.dimension_semantics<arbitrary>], iteration_bounds = array<i64: 2, 1, 1>, scalar_prefetch = 0 : i64, scratch_operands = 0 : i64, tpu.core_type = #tpu.core_type<tc>, window_params = [{transform_indices = @transform_0, window_bounds = array<i64: 1, 4, 8, 128>}, {transform_indices = @transform_1, window_bounds = array<i64: 1, 4, 8, 128>}, {transform_indices = @transform_2, window_bounds = array<i64: 1, 1, 4, 8, 128>}, {transform_indices = @transform_3, window_bounds = array<i64: 1, 1, 4, 8, 128>}]} {
    %c0_i32 = arith.constant 0 : i32
    %0 = arith.cmpi eq, %arg2, %c0_i32 : i32
    %1 = arith.extui %0 : i1 to i32
    %c0_i32_0 = arith.constant 0 : i32
    %2 = arith.cmpi ne, %1, %c0_i32_0 : i32
    scf.if %2 {
      %cst = arith.constant 0.000000e+00 : f32
      %106 = vector.broadcast %cst : f32 to vector<1x1x4x8x128xf32>
      %c0_104 = arith.constant 0 : index
      %c0_105 = arith.constant 0 : index
      %c0_106 = arith.constant 0 : index
      %c0_107 = arith.constant 0 : index
      %c0_108 = arith.constant 0 : index
      %107 = vector.load %arg5[%c0_104, %c0_105, %c0_106, %c0_107, %c0_108] : memref<1x1x4x8x128xf32, #tpu.memory_space<vmem>>, vector<1x1x4x8x128xf32>
      tpu.vector_store %arg5[%c0_104, %c0_105, %c0_106, %c0_107, %c0_108], %106 {strides = array<i32>} : memref<1x1x4x8x128xf32, #tpu.memory_space<vmem>>, vector<1x1x4x8x128xf32>,
      %cst_109 = arith.constant 0.000000e+00 : f32
      %108 = vector.broadcast %cst_109 : f32 to vector<1x1x4x8x128xf32>
      %c0_110 = arith.constant 0 : index
      %c0_111 = arith.constant 0 : index
      %c0_112 = arith.constant 0 : index
      %c0_113 = arith.constant 0 : index
      %c0_114 = arith.constant 0 : index
      %109 = vector.load %arg6[%c0_110, %c0_111, %c0_112, %c0_113, %c0_114] : memref<1x1x4x8x128xf32, #tpu.memory_space<vmem>>, vector<1x1x4x8x128xf32>
      tpu.vector_store %arg6[%c0_110, %c0_111, %c0_112, %c0_113, %c0_114], %108 {strides = array<i32>} : memref<1x1x4x8x128xf32, #tpu.memory_space<vmem>>, vector<1x1x4x8x128xf32>,
    } else {
    }
    %c0_i32_1 = arith.constant 0 : i32
    %c1_i32 = arith.constant 1 : i32
    %3 = arith.muli %c0_i32_1, %c1_i32 : i32
    %c0_i32_2 = arith.constant 0 : i32
    %4 = arith.addi %c0_i32_2, %3 : i32
    %c8_i32 = arith.constant 8 : i32
    %5 = arith.muli %4, %c8_i32 : i32
    %6 = tpu.assume_multiple %5, 8 : i32
    %c0 = arith.constant 0 : index
    %c0_3 = arith.constant 0 : index
    %7 = arith.index_cast %6 : i32 to index
    %c0_4 = arith.constant 0 : index
    %8 = vector.load %arg3[%c0, %c0_3, %7, %c0_4] : memref<1x4x8x128xf32, #tpu.memory_space<vmem>>, vector<1x1x8x128xf32>
    %9 = vector.shape_cast %8 : vector<1x1x8x128xf32> to vector<8x128xf32>
    %c0_5 = arith.constant 0 : index
    %c1 = arith.constant 1 : index
    %10 = arith.index_cast %6 : i32 to index
    %c0_6 = arith.constant 0 : index
    %11 = vector.load %arg3[%c0_5, %c1, %10, %c0_6] : memref<1x4x8x128xf32, #tpu.memory_space<vmem>>, vector<1x1x8x128xf32>
    %12 = vector.shape_cast %11 : vector<1x1x8x128xf32> to vector<8x128xf32>
    %c0_7 = arith.constant 0 : index
    %c2 = arith.constant 2 : index
    %13 = arith.index_cast %6 : i32 to index
    %c0_8 = arith.constant 0 : index
    %14 = vector.load %arg3[%c0_7, %c2, %13, %c0_8] : memref<1x4x8x128xf32, #tpu.memory_space<vmem>>, vector<1x1x8x128xf32>
    %15 = vector.shape_cast %14 : vector<1x1x8x128xf32> to vector<8x128xf32>
    %c0_9 = arith.constant 0 : index
    %c3 = arith.constant 3 : index
    %16 = arith.index_cast %6 : i32 to index
    %c0_10 = arith.constant 0 : index
    %17 = vector.load %arg3[%c0_9, %c3, %16, %c0_10] : memref<1x4x8x128xf32, #tpu.memory_space<vmem>>, vector<1x1x8x128xf32>
    %18 = vector.shape_cast %17 : vector<1x1x8x128xf32> to vector<8x128xf32>
    %19 = arith.maximumf %9, %12 : vector<8x128xf32>
    %20 = arith.maximumf %19, %15 : vector<8x128xf32>
    %21 = arith.maximumf %20, %18 : vector<8x128xf32>
    %22 = arith.subf %9, %21 : vector<8x128xf32>
    %23 = math.exp %22 : vector<8x128xf32>
    %24 = arith.subf %12, %21 : vector<8x128xf32>
    %25 = math.exp %24 : vector<8x128xf32>
    %26 = arith.subf %15, %21 : vector<8x128xf32>
    %27 = math.exp %26 : vector<8x128xf32>
    %28 = arith.subf %18, %21 : vector<8x128xf32>
    %29 = math.exp %28 : vector<8x128xf32>
    %30 = arith.addf %23, %25 : vector<8x128xf32>
    %31 = arith.addf %30, %27 : vector<8x128xf32>
    %32 = arith.addf %31, %29 : vector<8x128xf32>
    %33 = tpu.reciprocal %32 : vector<8x128xf32> -> vector<8x128xf32>
    %34 = arith.mulf %23, %33 : vector<8x128xf32>
    %c0_11 = arith.constant 0 : index
    %c0_12 = arith.constant 0 : index
    %35 = arith.index_cast %6 : i32 to index
    %c0_13 = arith.constant 0 : index
    %36 = vector.load %arg4[%c0_11, %c0_12, %35, %c0_13] : memref<1x4x8x128xf32, #tpu.memory_space<vmem>>, vector<1x1x8x128xf32>
    %37 = vector.shape_cast %36 : vector<1x1x8x128xf32> to vector<8x128xf32>
    %c0_14 = arith.constant 0 : index
    %c0_15 = arith.constant 0 : index
    %c0_16 = arith.constant 0 : index
    %c0_17 = arith.constant 0 : index
    %c0_18 = arith.constant 0 : index
    %38 = vector.load %arg5[%c0_14, %c0_15, %c0_16, %c0_17, %c0_18] : memref<1x1x4x8x128xf32, #tpu.memory_space<vmem>>, vector<1x1x1x8x128xf32>
    %39 = vector.shape_cast %38 : vector<1x1x1x8x128xf32> to vector<8x128xf32>
    %40 = arith.mulf %34, %37 : vector<8x128xf32>
    %41 = arith.addf %39, %40 : vector<8x128xf32>
    %c0_19 = arith.constant 0 : index
    %c0_20 = arith.constant 0 : index
    %c0_21 = arith.constant 0 : index
    %c0_22 = arith.constant 0 : index
    %c0_23 = arith.constant 0 : index
    %42 = vector.load %arg5[%c0_19, %c0_20, %c0_21, %c0_22, %c0_23] : memref<1x1x4x8x128xf32, #tpu.memory_space<vmem>>, vector<1x1x1x8x128xf32>
    %43 = vector.shape_cast %42 : vector<1x1x1x8x128xf32> to vector<8x128xf32>
    %44 = vector.shape_cast %41 : vector<8x128xf32> to vector<1x1x1x8x128xf32>
    tpu.vector_store %arg5[%c0_19, %c0_20, %c0_21, %c0_22, %c0_23], %44 {strides = array<i32>} : memref<1x1x4x8x128xf32, #tpu.memory_space<vmem>>, vector<1x1x1x8x128xf32>,
    %c0_24 = arith.constant 0 : index
    %c0_25 = arith.constant 0 : index
    %c0_26 = arith.constant 0 : index
    %c0_27 = arith.constant 0 : index
    %c0_28 = arith.constant 0 : index
    %45 = vector.load %arg6[%c0_24, %c0_25, %c0_26, %c0_27, %c0_28] : memref<1x1x4x8x128xf32, #tpu.memory_space<vmem>>, vector<1x1x1x8x128xf32>
    %46 = vector.shape_cast %45 : vector<1x1x1x8x128xf32> to vector<8x128xf32>
    %47 = arith.addf %34, %37 : vector<8x128xf32>
    %48 = arith.addf %46, %47 : vector<8x128xf32>
    %c0_29 = arith.constant 0 : index
    %c0_30 = arith.constant 0 : index
    %c0_31 = arith.constant 0 : index
    %c0_32 = arith.constant 0 : index
    %c0_33 = arith.constant 0 : index
    %49 = vector.load %arg6[%c0_29, %c0_30, %c0_31, %c0_32, %c0_33] : memref<1x1x4x8x128xf32, #tpu.memory_space<vmem>>, vector<1x1x1x8x128xf32>
    %50 = vector.shape_cast %49 : vector<1x1x1x8x128xf32> to vector<8x128xf32>
    %51 = vector.shape_cast %48 : vector<8x128xf32> to vector<1x1x1x8x128xf32>
    tpu.vector_store %arg6[%c0_29, %c0_30, %c0_31, %c0_32, %c0_33], %51 {strides = array<i32>} : memref<1x1x4x8x128xf32, #tpu.memory_space<vmem>>, vector<1x1x1x8x128xf32>,
    %52 = arith.mulf %25, %33 : vector<8x128xf32>
    %c0_34 = arith.constant 0 : index
    %c1_35 = arith.constant 1 : index
    %53 = arith.index_cast %6 : i32 to index
    %c0_36 = arith.constant 0 : index
    %54 = vector.load %arg4[%c0_34, %c1_35, %53, %c0_36] : memref<1x4x8x128xf32, #tpu.memory_space<vmem>>, vector<1x1x8x128xf32>
    %55 = vector.shape_cast %54 : vector<1x1x8x128xf32> to vector<8x128xf32>
    %c0_37 = arith.constant 0 : index
    %c0_38 = arith.constant 0 : index
    %c1_39 = arith.constant 1 : index
    %c0_40 = arith.constant 0 : index
    %c0_41 = arith.constant 0 : index
    %56 = vector.load %arg5[%c0_37, %c0_38, %c1_39, %c0_40, %c0_41] : memref<1x1x4x8x128xf32, #tpu.memory_space<vmem>>, vector<1x1x1x8x128xf32>
    %57 = vector.shape_cast %56 : vector<1x1x1x8x128xf32> to vector<8x128xf32>
    %58 = arith.mulf %52, %55 : vector<8x128xf32>
    %59 = arith.addf %57, %58 : vector<8x128xf32>
    %c0_42 = arith.constant 0 : index
    %c0_43 = arith.constant 0 : index
    %c1_44 = arith.constant 1 : index
    %c0_45 = arith.constant 0 : index
    %c0_46 = arith.constant 0 : index
    %60 = vector.load %arg5[%c0_42, %c0_43, %c1_44, %c0_45, %c0_46] : memref<1x1x4x8x128xf32, #tpu.memory_space<vmem>>, vector<1x1x1x8x128xf32>
    %61 = vector.shape_cast %60 : vector<1x1x1x8x128xf32> to vector<8x128xf32>
    %62 = vector.shape_cast %59 : vector<8x128xf32> to vector<1x1x1x8x128xf32>
    tpu.vector_store %arg5[%c0_42, %c0_43, %c1_44, %c0_45, %c0_46], %62 {strides = array<i32>} : memref<1x1x4x8x128xf32, #tpu.memory_space<vmem>>, vector<1x1x1x8x128xf32>,
    %c0_47 = arith.constant 0 : index
    %c0_48 = arith.constant 0 : index
    %c1_49 = arith.constant 1 : index
    %c0_50 = arith.constant 0 : index
    %c0_51 = arith.constant 0 : index
    %63 = vector.load %arg6[%c0_47, %c0_48, %c1_49, %c0_50, %c0_51] : memref<1x1x4x8x128xf32, #tpu.memory_space<vmem>>, vector<1x1x1x8x128xf32>
    %64 = vector.shape_cast %63 : vector<1x1x1x8x128xf32> to vector<8x128xf32>
    %65 = arith.addf %52, %55 : vector<8x128xf32>
    %66 = arith.addf %64, %65 : vector<8x128xf32>
    %c0_52 = arith.constant 0 : index
    %c0_53 = arith.constant 0 : index
    %c1_54 = arith.constant 1 : index
    %c0_55 = arith.constant 0 : index
    %c0_56 = arith.constant 0 : index
    %67 = vector.load %arg6[%c0_52, %c0_53, %c1_54, %c0_55, %c0_56] : memref<1x1x4x8x128xf32, #tpu.memory_space<vmem>>, vector<1x1x1x8x128xf32>
    %68 = vector.shape_cast %67 : vector<1x1x1x8x128xf32> to vector<8x128xf32>
    %69 = vector.shape_cast %66 : vector<8x128xf32> to vector<1x1x1x8x128xf32>
    tpu.vector_store %arg6[%c0_52, %c0_53, %c1_54, %c0_55, %c0_56], %69 {strides = array<i32>} : memref<1x1x4x8x128xf32, #tpu.memory_space<vmem>>, vector<1x1x1x8x128xf32>,
    %70 = arith.mulf %27, %33 : vector<8x128xf32>
    %c0_57 = arith.constant 0 : index
    %c2_58 = arith.constant 2 : index
    %71 = arith.index_cast %6 : i32 to index
    %c0_59 = arith.constant 0 : index
    %72 = vector.load %arg4[%c0_57, %c2_58, %71, %c0_59] : memref<1x4x8x128xf32, #tpu.memory_space<vmem>>, vector<1x1x8x128xf32>
    %73 = vector.shape_cast %72 : vector<1x1x8x128xf32> to vector<8x128xf32>
    %c0_60 = arith.constant 0 : index
    %c0_61 = arith.constant 0 : index
    %c2_62 = arith.constant 2 : index
    %c0_63 = arith.constant 0 : index
    %c0_64 = arith.constant 0 : index
    %74 = vector.load %arg5[%c0_60, %c0_61, %c2_62, %c0_63, %c0_64] : memref<1x1x4x8x128xf32, #tpu.memory_space<vmem>>, vector<1x1x1x8x128xf32>
    %75 = vector.shape_cast %74 : vector<1x1x1x8x128xf32> to vector<8x128xf32>
    %76 = arith.mulf %70, %73 : vector<8x128xf32>
    %77 = arith.addf %75, %76 : vector<8x128xf32>
    %c0_65 = arith.constant 0 : index
    %c0_66 = arith.constant 0 : index
    %c2_67 = arith.constant 2 : index
    %c0_68 = arith.constant 0 : index
    %c0_69 = arith.constant 0 : index
    %78 = vector.load %arg5[%c0_65, %c0_66, %c2_67, %c0_68, %c0_69] : memref<1x1x4x8x128xf32, #tpu.memory_space<vmem>>, vector<1x1x1x8x128xf32>
    %79 = vector.shape_cast %78 : vector<1x1x1x8x128xf32> to vector<8x128xf32>
    %80 = vector.shape_cast %77 : vector<8x128xf32> to vector<1x1x1x8x128xf32>
    tpu.vector_store %arg5[%c0_65, %c0_66, %c2_67, %c0_68, %c0_69], %80 {strides = array<i32>} : memref<1x1x4x8x128xf32, #tpu.memory_space<vmem>>, vector<1x1x1x8x128xf32>,
    %c0_70 = arith.constant 0 : index
    %c0_71 = arith.constant 0 : index
    %c2_72 = arith.constant 2 : index
    %c0_73 = arith.constant 0 : index
    %c0_74 = arith.constant 0 : index
    %81 = vector.load %arg6[%c0_70, %c0_71, %c2_72, %c0_73, %c0_74] : memref<1x1x4x8x128xf32, #tpu.memory_space<vmem>>, vector<1x1x1x8x128xf32>
    %82 = vector.shape_cast %81 : vector<1x1x1x8x128xf32> to vector<8x128xf32>
    %83 = arith.addf %70, %73 : vector<8x128xf32>
    %84 = arith.addf %82, %83 : vector<8x128xf32>
    %c0_75 = arith.constant 0 : index
    %c0_76 = arith.constant 0 : index
    %c2_77 = arith.constant 2 : index
    %c0_78 = arith.constant 0 : index
    %c0_79 = arith.constant 0 : index
    %85 = vector.load %arg6[%c0_75, %c0_76, %c2_77, %c0_78, %c0_79] : memref<1x1x4x8x128xf32, #tpu.memory_space<vmem>>, vector<1x1x1x8x128xf32>
    %86 = vector.shape_cast %85 : vector<1x1x1x8x128xf32> to vector<8x128xf32>
    %87 = vector.shape_cast %84 : vector<8x128xf32> to vector<1x1x1x8x128xf32>
    tpu.vector_store %arg6[%c0_75, %c0_76, %c2_77, %c0_78, %c0_79], %87 {strides = array<i32>} : memref<1x1x4x8x128xf32, #tpu.memory_space<vmem>>, vector<1x1x1x8x128xf32>,
    %88 = arith.mulf %29, %33 : vector<8x128xf32>
    %c0_80 = arith.constant 0 : index
    %c3_81 = arith.constant 3 : index
    %89 = arith.index_cast %6 : i32 to index
    %c0_82 = arith.constant 0 : index
    %90 = vector.load %arg4[%c0_80, %c3_81, %89, %c0_82] : memref<1x4x8x128xf32, #tpu.memory_space<vmem>>, vector<1x1x8x128xf32>
    %91 = vector.shape_cast %90 : vector<1x1x8x128xf32> to vector<8x128xf32>
    %c0_83 = arith.constant 0 : index
    %c0_84 = arith.constant 0 : index
    %c3_85 = arith.constant 3 : index
    %c0_86 = arith.constant 0 : index
    %c0_87 = arith.constant 0 : index
    %92 = vector.load %arg5[%c0_83, %c0_84, %c3_85, %c0_86, %c0_87] : memref<1x1x4x8x128xf32, #tpu.memory_space<vmem>>, vector<1x1x1x8x128xf32>
    %93 = vector.shape_cast %92 : vector<1x1x1x8x128xf32> to vector<8x128xf32>
    %94 = arith.mulf %88, %91 : vector<8x128xf32>
    %95 = arith.addf %93, %94 : vector<8x128xf32>
    %c0_88 = arith.constant 0 : index
    %c0_89 = arith.constant 0 : index
    %c3_90 = arith.constant 3 : index
    %c0_91 = arith.constant 0 : index
    %c0_92 = arith.constant 0 : index
    %96 = vector.load %arg5[%c0_88, %c0_89, %c3_90, %c0_91, %c0_92] : memref<1x1x4x8x128xf32, #tpu.memory_space<vmem>>, vector<1x1x1x8x128xf32>
    %97 = vector.shape_cast %96 : vector<1x1x1x8x128xf32> to vector<8x128xf32>
    %98 = vector.shape_cast %95 : vector<8x128xf32> to vector<1x1x1x8x128xf32>
    tpu.vector_store %arg5[%c0_88, %c0_89, %c3_90, %c0_91, %c0_92], %98 {strides = array<i32>} : memref<1x1x4x8x128xf32, #tpu.memory_space<vmem>>, vector<1x1x1x8x128xf32>,
    %c0_93 = arith.constant 0 : index
    %c0_94 = arith.constant 0 : index
    %c3_95 = arith.constant 3 : index
    %c0_96 = arith.constant 0 : index
    %c0_97 = arith.constant 0 : index
    %99 = vector.load %arg6[%c0_93, %c0_94, %c3_95, %c0_96, %c0_97] : memref<1x1x4x8x128xf32, #tpu.memory_space<vmem>>, vector<1x1x1x8x128xf32>
    %100 = vector.shape_cast %99 : vector<1x1x1x8x128xf32> to vector<8x128xf32>
    %101 = arith.addf %88, %91 : vector<8x128xf32>
    %102 = arith.addf %100, %101 : vector<8x128xf32>
    %c0_98 = arith.constant 0 : index
    %c0_99 = arith.constant 0 : index
    %c3_100 = arith.constant 3 : index
    %c0_101 = arith.constant 0 : index
    %c0_102 = arith.constant 0 : index
    %103 = vector.load %arg6[%c0_98, %c0_99, %c3_100, %c0_101, %c0_102] : memref<1x1x4x8x128xf32, #tpu.memory_space<vmem>>, vector<1x1x1x8x128xf32>
    %104 = vector.shape_cast %103 : vector<1x1x1x8x128xf32> to vector<8x128xf32>
    %105 = vector.shape_cast %102 : vector<8x128xf32> to vector<1x1x1x8x128xf32>
    tpu.vector_store %arg6[%c0_98, %c0_99, %c3_100, %c0_101, %c0_102], %105 {strides = array<i32>} : memref<1x1x4x8x128xf32, #tpu.memory_space<vmem>>, vector<1x1x1x8x128xf32>,
    %c1_i32_103 = arith.constant 1 : i32
    return
  }
  func.func @transform_0(%arg0: i32, %arg1: i32, %arg2: i32) -> (i32, i32, i32, i32) {
    %c1_i32 = arith.constant 1 : i32
    %0 = arith.muli %arg1, %c1_i32 : i32
    %1 = arith.addi %0, %arg2 : i32
    %c0_i32 = arith.constant 0 : i32
    %c0_i32_0 = arith.constant 0 : i32
    %c0_i32_1 = arith.constant 0 : i32
    return %arg0, %c0_i32, %1, %c0_i32_0 : i32, i32, i32, i32
  }
  func.func @transform_1(%arg0: i32, %arg1: i32, %arg2: i32) -> (i32, i32, i32, i32) {
    %c1_i32 = arith.constant 1 : i32
    %0 = arith.muli %arg1, %c1_i32 : i32
    %1 = arith.addi %0, %arg2 : i32
    %c0_i32 = arith.constant 0 : i32
    %c0_i32_0 = arith.constant 0 : i32
    %c0_i32_1 = arith.constant 0 : i32
    return %arg0, %c0_i32, %1, %c0_i32_0 : i32, i32, i32, i32
  }
  func.func @transform_2(%arg0: i32, %arg1: i32, %arg2: i32) -> (i32, i32, i32, i32, i32) {
    %c0_i32 = arith.constant 0 : i32
    %c0_i32_0 = arith.constant 0 : i32
    %c0_i32_1 = arith.constant 0 : i32
    %c0_i32_2 = arith.constant 0 : i32
    return %arg0, %arg1, %c0_i32, %c0_i32_0, %c0_i32_1 : i32, i32, i32, i32, i32
  }
  func.func @transform_3(%arg0: i32, %arg1: i32, %arg2: i32) -> (i32, i32, i32, i32, i32) {
    %c0_i32 = arith.constant 0 : i32
    %c0_i32_0 = arith.constant 0 : i32
    %c0_i32_1 = arith.constant 0 : i32
    %c0_i32_2 = arith.constant 0 : i32
    return %arg0, %arg1, %c0_i32, %c0_i32_0, %c0_i32_1 : i32, i32, i32, i32, i32
  }
}

</mosaic_0001>

<llo_original>
// kernel: tpu_custom_call.1
$region0: #{tpu_custom_call.1}
  #allocation0 [shape = 'u32[]', space=smem, size = 0x4, offset = 0x4, fixed_abs, tag = 'smem constant byte address 0x4 - core index']
  #allocation1 [shape = 'u32[144,128]{1,0:T(1,128)}', space=vmem, size = 0x12000, scoped, tag = 'internal scratch']
  %s0 = inlined_call_operand.hbm [shape: f32[2,4,8,128], index: 0, kind: input, shape index: {}]
  %s1 = inlined_call_operand.hbm [shape: f32[2,4,8,128], index: 1, kind: input, shape index: {}]
  %s2 = inlined_call_operand.hbm [shape: f32[2,1,4,8,128], index: 2, kind: output, shape index: {0}]
  %s3 = inlined_call_operand.hbm [shape: f32[2,1,4,8,128], index: 3, kind: output, shape index: {1}]
  %4 = xla_tuple %s2, %s3
  %s5 = sld [smem:[#allocation0]]
  $region61: #{tpu_custom_call.1} parent=0
    _
  %s7 = ssub.s32 1, %s5
  %s8 = scalar_select 0, %s7, %s5
  $region1: #{tpu_custom_call.1} parent=0
    #allocation2 [shape = 'u8[32768]{0}', space=vmem, size = 0x8000, scoped, tag = 'input window, operand 0']
    #allocation3 [shape = 's32[2]{0}', space=sflag, size = 0x8, scoped, tag = 'scoped memory for tpu_custom_call.1']
    #allocation4 [shape = 's32[2]{0}', space=sflag, size = 0x8, scoped, tag = 'scoped memory for tpu_custom_call.1']
    #allocation5 [shape = 'u8[32768]{0}', space=vmem, size = 0x8000, scoped, tag = 'input window, operand 1']
    #allocation6 [shape = 's32[2]{0}', space=sflag, size = 0x8, scoped, tag = 'scoped memory for tpu_custom_call.1']
    #allocation7 [shape = 'u8[32768]{0}', space=vmem, size = 0x8000, scoped, tag = 'output window, operand 0']
    #allocation8 [shape = 'u8[32768]{0}', space=vmem, size = 0x8000, scoped, tag = 'output window, operand 1']
    #allocation9 [shape = 's32[2]{0}', space=sflag, size = 0x8, scoped, tag = 'scoped memory for tpu_custom_call.1']
    %9 = vsyncpa [#allocation3], 0
    %s10 = scalar_lea.sflag [#allocation3], 1
    %11 = vsyncpa %s10, 0
    %12 = vsyncpa [#allocation6], 0
    %s13 = scalar_lea.sflag [#allocation6], 1
    %14 = vsyncpa %s13, 0
    %15 = vsyncpa [#allocation4], 0
    %s16 = scalar_lea.sflag [#allocation4], 1
    %17 = vsyncpa %s16, 0
    %18 = vsyncpa [#allocation9], 0
    %s19 = scalar_lea.sflag [#allocation9], 1
    %20 = vsyncpa %s19, 0
    loop: start=0, step=1, limit=4
    $region2: #{tpu_custom_call.1} parent=1 // loop_pre_header
      _
    $region3: #{tpu_custom_call.1} parent=1 // loop_header
      %s22 = sphi 0, %s26
      %p23 = scmp.ge.s32.totalorder %s22, 4
      %s29 = sphi 0, %s48
      %s30 = sphi 0, %s44
      %s31 = sphi 0, %s40
      %s32 = sphi 0, %s29
      %s33 = sphi 0, %s30
      %s34 = sphi 0, %s31
      %s35 = sphi 0, %s32
      %s36 = sphi 0, %s33
      %s37 = sphi 0, %s34
      %s55 = sphi 0, %s57
      %s58 = sphi 0, %s55
      %s59 = sphi 0, %s58
      %s75 = sphi 0, %s59
      %s85 = sphi 0, %s87
      %s88 = sphi 0, %s85
      %s89 = sphi 0, %s88
      %s105 = sphi 0, %s89
      %s113 = sphi 0, %s115
      %s116 = sphi 0, %s113
      %s117 = sphi 0, %s116
      %s133 = sphi 0, %s117
      %s141 = sphi 0, %s143
      %s144 = sphi 0, %s141
      %s145 = sphi 0, %s144
      %s161 = sphi 0, %s145
    $region4: #{tpu_custom_call.1} parent=1 // loop_header_branch
      %25 = sbr.rel (%p23) target = $region8
    $region5: #{tpu_custom_call.1} parent=1 // loop_body
      %s27 = ssub.s32 %s22, 1
      %s28 = ssub.s32 %s22, 2
      %s38 = sadd.s32 1, %s31
      %p39 = scmp.ge.s32.totalorder %s38, 1
      %s40 = scalar_select %p39, 0, %s38
      %s41 = sadd.s32 1, %s30
      %s42 = scalar_select %p39, %s41, %s30
      %p43 = scmp.ge.s32.totalorder %s42, 1
      %s44 = scalar_select %p43, 0, %s42
      %s45 = sadd.s32 1, %s29
      %s46 = scalar_select %p43, %s45, %s29
      %p47 = scmp.ge.s32.totalorder %s46, 2
      %s48 = scalar_select %p47, 0, %s46
      %s49 = sadd.s32 %s30, %s31
      %s50 = sadd.s32 %s44, %s40
      %s51 = ssub.s32 %s29, %s48
      %s52 = ssub.s32 %s49, %s50
      %s53 = sor.u32 %s51, %s52
      %p54 = scmp.eq.s32.totalorder %s53, 0
      %s56 = sadd.s32 %s55, 1
      %s57 = scalar_select %p54, %s55, %s56
      %p60 = pneg %p54
      %p61 = scmp.eq.s32.totalorder %s22, 1
      %p62 = por %p60, %p61
      %p63 = scmp.ne.s32.totalorder %s55, %s58
      %p64 = scmp.eq.s32.totalorder %s22, 0
      %p65 = por %p63, %p64
      %p66 = scmp.ne.s32.totalorder %s55, %s58
      %p67 = scmp.eq.s32.totalorder %s27, 1
      %p68 = por %p66, %p67
      %p69 = scmp.ne.s32.totalorder %s58, %s59
      %p70 = scmp.eq.s32.totalorder %s27, 0
      %p71 = por %p69, %p70
      %p72 = scmp.ne.s32.totalorder %s58, %s59
      %p73 = scmp.eq.s32.totalorder %s28, 1
      %p74 = por %p72, %p73
      %p76 = scmp.ne.s32.totalorder %s59, %s75
      %p77 = scmp.eq.s32.totalorder %s28, 0
      %p78 = por %p76, %p77
      %s79 = sadd.s32 %s30, %s31
      %s80 = sadd.s32 %s44, %s40
      %s81 = ssub.s32 %s29, %s48
      %s82 = ssub.s32 %s79, %s80
      %s83 = sor.u32 %s81, %s82
      %p84 = scmp.eq.s32.totalorder %s83, 0
      %s86 = sadd.s32 %s85, 1
      %s87 = scalar_select %p84, %s85, %s86
      %p90 = pneg %p84
      %p91 = scmp.eq.s32.totalorder %s22, 1
      %p92 = por %p90, %p91
      %p93 = scmp.ne.s32.totalorder %s85, %s88
      %p94 = scmp.eq.s32.totalorder %s22, 0
      %p95 = por %p93, %p94
      %p96 = scmp.ne.s32.totalorder %s85, %s88
      %p97 = scmp.eq.s32.totalorder %s27, 1
      %p98 = por %p96, %p97
      %p99 = scmp.ne.s32.totalorder %s88, %s89
      %p100 = scmp.eq.s32.totalorder %s27, 0
      %p101 = por %p99, %p100
      %p102 = scmp.ne.s32.totalorder %s88, %s89
      %p103 = scmp.eq.s32.totalorder %s28, 1
      %p104 = por %p102, %p103
      %p106 = scmp.ne.s32.totalorder %s89, %s105
      %p107 = scmp.eq.s32.totalorder %s28, 0
      %p108 = por %p106, %p107
      %s109 = ssub.s32 %s29, %s48
      %s110 = ssub.s32 %s30, %s44
      %s111 = sor.u32 %s109, %s110
      %p112 = scmp.eq.s32.totalorder %s111, 0
      %s114 = sadd.s32 %s113, 1
      %s115 = scalar_select %p112, %s113, %s114
      %p118 = pneg %p112
      %p119 = scmp.eq.s32.totalorder %s22, 1
      %p120 = por %p118, %p119
      %p121 = scmp.ne.s32.totalorder %s113, %s116
      %p122 = scmp.eq.s32.totalorder %s22, 0
      %p123 = por %p121, %p122
      %p124 = scmp.ne.s32.totalorder %s113, %s116
      %p125 = scmp.eq.s32.totalorder %s27, 1
      %p126 = por %p124, %p125
      %p127 = scmp.ne.s32.totalorder %s116, %s117
      %p128 = scmp.eq.s32.totalorder %s27, 0
      %p129 = por %p127, %p128
      %p130 = scmp.ne.s32.totalorder %s116, %s117
      %p131 = scmp.eq.s32.totalorder %s28, 1
      %p132 = por %p130, %p131
      %p134 = scmp.ne.s32.totalorder %s117, %s133
      %p135 = scmp.eq.s32.totalorder %s28, 0
      %p136 = por %p134, %p135
      %s137 = ssub.s32 %s29, %s48
      %s138 = ssub.s32 %s30, %s44
      %s139 = sor.u32 %s137, %s138
      %p140 = scmp.eq.s32.totalorder %s139, 0
      %s142 = sadd.s32 %s141, 1
      %s143 = scalar_select %p140, %s141, %s142
      %p146 = pneg %p140
      %p147 = scmp.eq.s32.totalorder %s22, 1
      %p148 = por %p146, %p147
      %p149 = scmp.ne.s32.totalorder %s141, %s144
      %p150 = scmp.eq.s32.totalorder %s22, 0
      %p151 = por %p149, %p150
      %p152 = scmp.ne.s32.totalorder %s141, %s144
      %p153 = scmp.eq.s32.totalorder %s27, 1
      %p154 = por %p152, %p153
      %p155 = scmp.ne.s32.totalorder %s144, %s145
      %p156 = scmp.eq.s32.totalorder %s27, 0
      %p157 = por %p155, %p156
      %p158 = scmp.ne.s32.totalorder %s144, %s145
      %p159 = scmp.eq.s32.totalorder %s28, 1
      %p160 = por %p158, %p159
      %p162 = scmp.ne.s32.totalorder %s145, %s161
      %p163 = scmp.eq.s32.totalorder %s28, 0
      %p164 = por %p162, %p163
      %p165 = scmp.le.s32.totalorder 1, %s22
      %p166 = scmp.lt.s32.totalorder %s22, 3
      %p167 = pnand %p165, %p166
      %p168 = pneg %p167
      // Predicated region
      $region9: #{tpu_custom_call.1} parent=5 // pred_check
        _
      $region10: #{tpu_custom_call.1} parent=5 // pred_check_branch
        %170 = sbr.rel (%p167) target = $region12
      $region11: #{tpu_custom_call.1} parent=5 // pred_region
        %s171 = ssub.s32 %s22, 1
      $region12: #{tpu_custom_call.1} parent=5 // pred_fallthru
        _
      %p172 = scmp.lt.s32.totalorder %s22, 2
      // Predicated region
      $region13: #{tpu_custom_call.1} parent=5 // pred_check
        %p173 = pneg %p172
      $region14: #{tpu_custom_call.1} parent=5 // pred_check_branch
        %175 = sbr.rel (%p173) target = $region16
      $region15: #{tpu_custom_call.1} parent=5 // pred_region
        // Predicated region
        $region17: #{tpu_custom_call.1} parent=15 // pred_check
          %p176 = pneg %p65
        $region18: #{tpu_custom_call.1} parent=15 // pred_check_branch
          %178 = sbr.rel (%p176) target = $region20
        $region19: #{tpu_custom_call.1} parent=15 // pred_region
          %s179 = sand.u32 %s55, 1
          %s180 = scalar_lea.sflag [#allocation3], %s179
          %s181 = sand.u32 %s55, 1
          %s182 = smul.addr %s181, 32
          %s183 = scalar_lea.vmem [#allocation2], %s182
          %s184 = sadd.s32 %s30, %s31
          %s186 = ssub.s32 512, 512
          %187 = vsyncadd %s180, %s186
          %s188 = smul.addr %s29, 4
          %s189 = sadd.s32 %s184, %s188
          %s190 = smul.addr %s189, 128
          %s191 = scalar_lea.hbm %s0, %s190
          %s192 = sshll.u32 %s183, 4
          %s193 = int_to_ptr.vmem [resolvable:$true] %s192
          %198 = dma.hbm_to_vmem [thread:$0]  %s191, 512, %s193, %s180, 128, 128, 8
        $region20: #{tpu_custom_call.1} parent=15 // pred_fallthru
          _
        // Predicated region
        $region21: #{tpu_custom_call.1} parent=15 // pred_check
          %p199 = pneg %p95
        $region22: #{tpu_custom_call.1} parent=15 // pred_check_branch
          %201 = sbr.rel (%p199) target = $region24
        $region23: #{tpu_custom_call.1} parent=15 // pred_region
          %s202 = sand.u32 %s85, 1
          %s203 = scalar_lea.sflag [#allocation6], %s202
          %s204 = sand.u32 %s85, 1
          %s205 = smul.addr %s204, 32
          %s206 = scalar_lea.vmem [#allocation5], %s205
          %s207 = sadd.s32 %s30, %s31
          %s209 = ssub.s32 512, 512
          %210 = vsyncadd %s203, %s209
          %s211 = smul.addr %s29, 4
          %s212 = sadd.s32 %s207, %s211
          %s213 = smul.addr %s212, 128
          %s214 = scalar_lea.hbm %s1, %s213
          %s215 = sshll.u32 %s206, 4
          %s216 = int_to_ptr.vmem [resolvable:$true] %s215
          %221 = dma.hbm_to_vmem [thread:$0]  %s214, 512, %s216, %s203, 128, 128, 8
        $region24: #{tpu_custom_call.1} parent=15 // pred_fallthru
          _
      $region16: #{tpu_custom_call.1} parent=5 // pred_fallthru
        _
      %p222 = scmp.le.s32.totalorder 1, %s22
      %p223 = scmp.lt.s32.totalorder %s22, 3
      %p224 = pnand %p222, %p223
      %p225 = pneg %p224
      // Predicated region
      $region25: #{tpu_custom_call.1} parent=5 // pred_check
        _
      $region26: #{tpu_custom_call.1} parent=5 // pred_check_branch
        %227 = sbr.rel (%p224) target = $region28
      $region27: #{tpu_custom_call.1} parent=5 // pred_region
        %s228 = ssub.s32 %s22, 1
        %s229 = sand.u32 %s58, 1
        %s230 = scalar_lea.sflag [#allocation3], %s229
        %s231 = sand.u32 %s58, 1
        %s232 = smul.addr %s231, 32
        %s233 = scalar_lea.vmem [#allocation2], %s232
        // Predicated region
        $region29: #{tpu_custom_call.1} parent=27 // pred_check
          %p234 = pneg %p71
        $region30: #{tpu_custom_call.1} parent=27 // pred_check_branch
          %236 = sbr.rel (%p234) target = $region32
        $region31: #{tpu_custom_call.1} parent=27 // pred_region
          %237 = dma.done %s230, 512
        $region32: #{tpu_custom_call.1} parent=27 // pred_fallthru
          _
        %s238 = sand.u32 %s88, 1
        %s239 = scalar_lea.sflag [#allocation6], %s238
        %s240 = sand.u32 %s88, 1
        %s241 = smul.addr %s240, 32
        %s242 = scalar_lea.vmem [#allocation5], %s241
        // Predicated region
        $region33: #{tpu_custom_call.1} parent=27 // pred_check
          %p243 = pneg %p101
        $region34: #{tpu_custom_call.1} parent=27 // pred_check_branch
          %245 = sbr.rel (%p243) target = $region36
        $region35: #{tpu_custom_call.1} parent=27 // pred_region
          %246 = dma.done %s239, 512
        $region36: #{tpu_custom_call.1} parent=27 // pred_fallthru
          _
        %s247 = sand.u32 %s58, 1
        %s248 = scalar_lea.sflag [#allocation3], %s247
        %s249 = sand.u32 %s58, 1
        %s250 = smul.addr %s249, 32
        %s251 = scalar_lea.vmem [#allocation2], %s250
        %p252 = pneg %p71
        %p253 = pneg %p68
        %s254 = sand.u32 %s88, 1
        %s255 = scalar_lea.sflag [#allocation6], %s254
        %s256 = sand.u32 %s88, 1
        %s257 = smul.addr %s256, 32
        %s258 = scalar_lea.vmem [#allocation5], %s257
        %p259 = pneg %p101
        %p260 = pneg %p98
        %p261 = pneg %p129
        %p262 = pneg %p126
        %s263 = sand.u32 %s116, 1
        %s264 = scalar_lea.sflag [#allocation4], %s263
        %s265 = sand.u32 %s116, 1
        %s266 = smul.addr %s265, 32
        %s267 = scalar_lea.vmem [#allocation7], %s266
        %p268 = pneg %p157
        %p269 = pneg %p154
        %s270 = sand.u32 %s144, 1
        %s271 = scalar_lea.sflag [#allocation9], %s270
        %s272 = sand.u32 %s144, 1
        %s273 = smul.addr %s272, 32
        %s274 = scalar_lea.vmem [#allocation8], %s273
        %s275 = sadd.s32 %s33, %s34
        %s276 = sadd.s32 %s33, %s34
        %p277 = scmp.eq.s32.totalorder %s34, 0
        // Predicated region
        $region37: #{tpu_custom_call.1} parent=27 // pred_check
          %p278 = pneg %p277
        $region38: #{tpu_custom_call.1} parent=27 // pred_check_branch
          %280 = sbr.rel (%p278) target = $region40
        $region39: #{tpu_custom_call.1} parent=27 // pred_region
          %281 = vst [vmem:[%s267] sm:$0xff] 0.0
          %282 = vst [vmem:[%s267 + $0x8] sm:$0xff] 0.0
          %283 = vst [vmem:[%s267 + $0x10] sm:$0xff] 0.0
          %284 = vst [vmem:[%s267 + $0x18] sm:$0xff] 0.0
          %285 = vst [vmem:[%s274] sm:$0xff] 0.0
          %286 = vst [vmem:[%s274 + $0x8] sm:$0xff] 0.0
          %287 = vst [vmem:[%s274 + $0x10] sm:$0xff] 0.0
          %288 = vst [vmem:[%s274 + $0x18] sm:$0xff] 0.0
        $region40: #{tpu_custom_call.1} parent=27 // pred_fallthru
          _
        %v289 = vld [vmem:[%s233] sm:$0xff]
        %s290 = sadd.s32 0, 8
        %s291 = scalar_lea.vmem %s233, %s290 [#allocation2]
        %v292 = vld [vmem:[%s291] sm:$0xff]
        %s293 = sadd.s32 0, 16
        %s294 = scalar_lea.vmem %s233, %s293 [#allocation2]
        %v295 = vld [vmem:[%s294] sm:$0xff]
        %s296 = sadd.s32 0, 24
        %s297 = scalar_lea.vmem %s233, %s296 [#allocation2]
        %v298 = vld [vmem:[%s297] sm:$0xff]
        %v299 = vmax.f32 %v289, %v292
        %v300 = vmax.f32 %v299, %v295
        %v301 = vmax.f32 %v300, %v298
        %v302 = vsub.f32 %v289, %v301
        %v303 = vmul.f32 %v302, 1.442695
        %v304 = vpow.pop %v303
        %v305 = vsub.f32 %v292, %v301
        %v306 = vmul.f32 %v305, 1.442695
        %v307 = vpow.pop %v306
        %v308 = vsub.f32 %v295, %v301
        %v309 = vmul.f32 %v308, 1.442695
        %v310 = vpow.pop %v309
        %v311 = vsub.f32 %v298, %v301
        %v312 = vmul.f32 %v311, 1.442695
        %v313 = vpow.pop %v312
        %v314 = vadd.f32 %v304, %v307
        %v315 = vadd.f32 %v314, %v310
        %v316 = vadd.f32 %v315, %v313
        %v317 = vrcp.pop %v316
        %v318 = vmul.f32 %v304, %v317
        %v319 = vld [vmem:[%s242] sm:$0xff]
        %v320 = vld [vmem:[%s267] sm:$0xff]
        %v321 = vmul.f32 %v318, %v319
        %v322 = vadd.f32 %v320, %v321
        %323 = vst [vmem:[%s267] sm:$0xff] %v322
        %v324 = vld [vmem:[%s274] sm:$0xff]
        %v325 = vadd.f32 %v318, %v319
        %v326 = vadd.f32 %v324, %v325
        %327 = vst [vmem:[%s274] sm:$0xff] %v326
        %v328 = vmul.f32 %v307, %v317
        %s329 = scalar_lea.vmem %s242, %s290 [#allocation5]
        %v330 = vld [vmem:[%s329] sm:$0xff]
        %s331 = scalar_lea.vmem %s267, 8 [#allocation7]
        %v332 = vld [vmem:[%s331] sm:$0xff]
        %v333 = vmul.f32 %v328, %v330
        %v334 = vadd.f32 %v332, %v333
        %335 = vst [vmem:[%s331] sm:$0xff] %v334
        %s336 = scalar_lea.vmem %s274, 8 [#allocation8]
        %v337 = vld [vmem:[%s336] sm:$0xff]
        %v338 = vadd.f32 %v328, %v330
        %v339 = vadd.f32 %v337, %v338
        %340 = vst [vmem:[%s336] sm:$0xff] %v339
        %v341 = vmul.f32 %v310, %v317
        %s342 = scalar_lea.vmem %s242, %s293 [#allocation5]
        %v343 = vld [vmem:[%s342] sm:$0xff]
        %s344 = scalar_lea.vmem %s267, 16 [#allocation7]
        %v345 = vld [vmem:[%s344] sm:$0xff]
        %v346 = vmul.f32 %v341, %v343
        %v347 = vadd.f32 %v345, %v346
        %348 = vst [vmem:[%s344] sm:$0xff] %v347
        %s349 = scalar_lea.vmem %s274, 16 [#allocation8]
        %v350 = vld [vmem:[%s349] sm:$0xff]
        %v351 = vadd.f32 %v341, %v343
        %v352 = vadd.f32 %v350, %v351
        %353 = vst [vmem:[%s349] sm:$0xff] %v352
        %v354 = vmul.f32 %v313, %v317
        %s355 = scalar_lea.vmem %s242, %s296 [#allocation5]
        %v356 = vld [vmem:[%s355] sm:$0xff]
        %s357 = scalar_lea.vmem %s267, 24 [#allocation7]
        %v358 = vld [vmem:[%s357] sm:$0xff]
        %v359 = vmul.f32 %v354, %v356
        %v360 = vadd.f32 %v358, %v359
        %361 = vst [vmem:[%s357] sm:$0xff] %v360
        %s362 = scalar_lea.vmem %s274, 24 [#allocation8]
        %v363 = vld [vmem:[%s362] sm:$0xff]
        %v364 = vadd.f32 %v354, %v356
        %v365 = vadd.f32 %v363, %v364
        %366 = vst [vmem:[%s362] sm:$0xff] %v365
        %s367 = sand.u32 %s116, 1
        %s368 = scalar_lea.sflag [#allocation4], %s367
        %s369 = sand.u32 %s116, 1
        %s370 = smul.addr %s369, 32
        %s371 = scalar_lea.vmem [#allocation7], %s370
        %s372 = sand.u32 %s144, 1
        %s373 = scalar_lea.sflag [#allocation9], %s372
        %s374 = sand.u32 %s144, 1
        %s375 = smul.addr %s374, 32
        %s376 = scalar_lea.vmem [#allocation8], %s375
        // Predicated region
        $region41: #{tpu_custom_call.1} parent=27 // pred_check
          %p377 = pneg %p126
        $region42: #{tpu_custom_call.1} parent=27 // pred_check_branch
          %379 = sbr.rel (%p377) target = $region44
        $region43: #{tpu_custom_call.1} parent=27 // pred_region
          %s381 = ssub.s32 512, 512
          %382 = vsyncadd %s368, %s381
          %s383 = smul.addr %s33, 4
          %s384 = smul.addr %s32, 4
          %s385 = sadd.s32 %s383, %s384
          %s386 = smul.addr %s385, 128
          %s387 = scalar_lea.hbm %s2, %s386
          %s388 = sshll.u32 %s371, 4
          %s389 = int_to_ptr.vmem [resolvable:$true] %s388
          %394 = dma.vmem_to_hbm [thread:$0]  %s389, 512, %s387, %s368, 128, 128, 8
        $region44: #{tpu_custom_call.1} parent=27 // pred_fallthru
          _
        // Predicated region
        $region45: #{tpu_custom_call.1} parent=27 // pred_check
          %p395 = pneg %p154
        $region46: #{tpu_custom_call.1} parent=27 // pred_check_branch
          %397 = sbr.rel (%p395) target = $region48
        $region47: #{tpu_custom_call.1} parent=27 // pred_region
          %s399 = ssub.s32 512, 512
          %400 = vsyncadd %s373, %s399
          %s401 = smul.addr %s33, 4
          %s402 = smul.addr %s32, 4
          %s403 = sadd.s32 %s401, %s402
          %s404 = smul.addr %s403, 128
          %s405 = scalar_lea.hbm %s3, %s404
          %s406 = sshll.u32 %s376, 4
          %s407 = int_to_ptr.vmem [resolvable:$true] %s406
          %412 = dma.vmem_to_hbm [thread:$0]  %s407, 512, %s405, %s373, 128, 128, 8
        $region48: #{tpu_custom_call.1} parent=27 // pred_fallthru
          _
      $region28: #{tpu_custom_call.1} parent=5 // pred_fallthru
        _
      %p413 = scmp.le.s32.totalorder 2, %s22
      // Predicated region
      $region49: #{tpu_custom_call.1} parent=5 // pred_check
        %p414 = pneg %p413
      $region50: #{tpu_custom_call.1} parent=5 // pred_check_branch
        %416 = sbr.rel (%p414) target = $region52
      $region51: #{tpu_custom_call.1} parent=5 // pred_region
        %s417 = ssub.s32 %s22, 2
        // Predicated region
        $region53: #{tpu_custom_call.1} parent=51 // pred_check
          %p418 = pneg %p132
        $region54: #{tpu_custom_call.1} parent=51 // pred_check_branch
          %420 = sbr.rel (%p418) target = $region56
        $region55: #{tpu_custom_call.1} parent=51 // pred_region
          %s421 = sand.u32 %s117, 1
          %s422 = scalar_lea.sflag [#allocation4], %s421
          %s423 = sand.u32 %s117, 1
          %s424 = smul.addr %s423, 32
          %s425 = scalar_lea.vmem [#allocation7], %s424
          %426 = dma.done %s422, 512
        $region56: #{tpu_custom_call.1} parent=51 // pred_fallthru
          _
        // Predicated region
        $region57: #{tpu_custom_call.1} parent=51 // pred_check
          %p427 = pneg %p160
        $region58: #{tpu_custom_call.1} parent=51 // pred_check_branch
          %429 = sbr.rel (%p427) target = $region60
        $region59: #{tpu_custom_call.1} parent=51 // pred_region
          %s430 = sand.u32 %s145, 1
          %s431 = scalar_lea.sflag [#allocation9], %s430
          %s432 = sand.u32 %s145, 1
          %s433 = smul.addr %s432, 32
          %s434 = scalar_lea.vmem [#allocation8], %s433
          %435 = dma.done %s431, 512
        $region60: #{tpu_custom_call.1} parent=51 // pred_fallthru
          _
      $region52: #{tpu_custom_call.1} parent=5 // pred_fallthru
        _
    $region6: #{tpu_custom_call.1} parent=1 // loop_footer
      %s26 = sadd.s32 1, %s22
    $region7: #{tpu_custom_call.1} parent=1 // loop_footer_branch
      %21 = sbr.rel target = $region3
    $region8: #{tpu_custom_call.1} parent=1 // loop_exit
      _
    %436 = vsyncpa [#allocation3], 1
    %s437 = scalar_lea.sflag [#allocation3], 1
    %438 = vsyncpa %s437, 1
    %439 = vsyncpa [#allocation6], 1
    %s440 = scalar_lea.sflag [#allocation6], 1
    %441 = vsyncpa %s440, 1
    %442 = vsyncpa [#allocation4], 1
    %s443 = scalar_lea.sflag [#allocation4], 1
    %444 = vsyncpa %s443, 1
    %445 = vsyncpa [#allocation9], 1
    %s446 = scalar_lea.sflag [#allocation9], 1
    %447 = vsyncpa %s446, 1

</llo_original>
